<compile_context>
chip_gen: v5e
topology: v5e:2x2
jax: 0.10.0
libtpu: 0.0.40
codegen_flags: <defaults>
</compile_context>

<pallas_src>
import jax
import jax.numpy as jnp
from jax.experimental import pallas as pl
from jax.experimental.pallas import tpu as pltpu


def decaying_exp_kernel(t_ref, a_ref, nib_ref, o_ref):
    # t_ref:   (1, tt)   time values for this (k, tj) tile (T on the lane axis)
    # a_ref:   (tn, 1)   scale per output dim
    # nib_ref: (tn, 1)   -1/b per output dim (precomputed in the wrapper)
    # o_ref:   (tn, tt)  output tile for grid point (k, tj, nj)
    # (tn,1) * exp((1,tt) * (tn,1)) -> (tn, tt); VPU mul + EUP exp, no divide.
    o_ref[...] = a_ref[...] * jnp.exp(t_ref[...] * nib_ref[...])


def decaying_exponential(x, a, b, *, tt_cap=1024, tn_cap=256):
    """x: (K, T, D) f32, a/b: (1, N, 1) f32 -> (K, N, T) f32."""
    K, T, D = x.shape
    N = a.shape[1]

    # Pre-slice the time feature (lane axis = T, D x less kernel DMA) and
    # precompute the negative reciprocal of b (only N values, wrapper-side f32).
    t = x[:, None, :, 0].astype(jnp.float32)               # (K, 1, T)
    a2 = a.reshape(N, 1).astype(jnp.float32)               # (N, 1)
    neg_inv_b = (-1.0 / b).reshape(N, 1).astype(jnp.float32)

    # Fixed lane-dense tiles + cdiv grid (Pallas masks the last partial block).
    # tt_cap is a multiple of 128, tn_cap a multiple of 8; small dims use the
    # full extent (always a legal block shape).
    assert tt_cap % 128 == 0 and tn_cap % 8 == 0
    tt = T if T <= tt_cap else tt_cap
    tn = N if N <= tn_cap else tn_cap
    grid = (K, pl.cdiv(T, tt), pl.cdiv(N, tn))              # nj innermost

    cost = pl.CostEstimate(
        flops=2 * K * N * T,                 # mul + (exp counted separately)
        transcendentals=K * N * T,
        bytes_accessed=4 * (K * N * T + K * T + 2 * N),
    )

    return pl.pallas_call(
        decaying_exp_kernel,
        out_shape=jax.ShapeDtypeStruct((K, N, T), jnp.float32),
        grid=grid,
        in_specs=[
            # time: per-k row, T-tile on lanes; constant over the inner nj loop
            # so it is DMA'd exactly once per (k, tj).
            pl.BlockSpec((None, 1, tt), lambda k, tj, nj: (k, 0, tj)),
            # a and -1/b: tiny (tn, 1) blocks, indexed only by nj.
            pl.BlockSpec((tn, 1), lambda k, tj, nj: (nj, 0)),
            pl.BlockSpec((tn, 1), lambda k, tj, nj: (nj, 0)),
        ],
        # Leading K dim squeezed (block size 1); kernel writes a (tn, tt) tile.
        out_specs=pl.BlockSpec((None, tn, tt), lambda k, tj, nj: (k, nj, tj)),
        compiler_params=pltpu.CompilerParams(
            dimension_semantics=("parallel", "parallel", "parallel")),
        cost_estimate=cost,
    )(t, a2, neg_inv_b)


if __name__ == "__main__":
    root = jax.random.PRNGKey(0)
    k1, k2 = jax.random.split(root)

    # --- Small-shape check, consistent with the (K, T, D) -> (K, N, T) contract.
    K, T, D, N = 2, 16, 4, 8
    x = jax.random.normal(k1, (K, T, D), dtype=jnp.float32)

    # Deterministic parameter init, mirroring __init__: a * ones(1, dims, 1), etc.
    a_init, b_init = 1.5, 2.0
    a = a_init * jnp.ones((1, N, 1), dtype=jnp.float32)
    b = b_init * jnp.ones((1, N, 1), dtype=jnp.float32)

    out = jax.block_until_ready(decaying_exponential(x, a, b))
    ref = a * jnp.exp(-x[:, None, :, 0] / b)          # pure-JAX reference
    assert out.shape == (K, N, T), out.shape
    assert out.dtype == jnp.float32
    assert jnp.allclose(out, ref, atol=1e-5, rtol=1e-5)

    # --- Slightly larger check that exercises the cdiv / masked-last-block path
    #     (T > tt cap -> two T tiles, the second partial).
    K2, T2, D2, N2 = 2, 1300, 3, 20
    x2 = jax.random.normal(k2, (K2, T2, D2), dtype=jnp.float32)
    a2p = 0.7 * jnp.ones((1, N2, 1), dtype=jnp.float32)
    b2p = 1.3 * jnp.ones((1, N2, 1), dtype=jnp.float32)

    out2 = jax.block_until_ready(decaying_exponential(x2, a2p, b2p))
    ref2 = a2p * jnp.exp(-x2[:, None, :, 0] / b2p)
    assert out2.shape == (K2, N2, T2)
    assert jnp.allclose(out2, ref2, atol=1e-5, rtol=1e-5)

    print("KERNEL_OK")
</pallas_src>

<mosaic_0001>
module attributes {stable_mosaic.version = 11 : i64} {
  func.func @decaying_exp_kernel(%arg0: i32, %arg1: i32, %arg2: i32, %arg3: memref<1x1x16xf32, #tpu.memory_space<vmem>>, %arg4: memref<8x1xf32, #tpu.memory_space<vmem>>, %arg5: memref<8x1xf32, #tpu.memory_space<vmem>>, %arg6: memref<1x8x16xf32, #tpu.memory_space<vmem>>) attributes {dimension_semantics = [#tpu.dimension_semantics<parallel>, #tpu.dimension_semantics<parallel>, #tpu.dimension_semantics<parallel>], iteration_bounds = array<i64: 2, 1, 1>, scalar_prefetch = 0 : i64, scratch_operands = 0 : i64, tpu.core_type = #tpu.core_type<tc>, window_params = [{transform_indices = @transform_0, window_bounds = array<i64: 1, 1, 16>}, {transform_indices = @transform_1, window_bounds = array<i64: 8, 1>}, {transform_indices = @transform_2, window_bounds = array<i64: 8, 1>}, {transform_indices = @transform_3, window_bounds = array<i64: 1, 8, 16>}]} {
    %c0 = arith.constant 0 : index
    %c0_0 = arith.constant 0 : index
    %0 = vector.load %arg4[%c0, %c0_0] : memref<8x1xf32, #tpu.memory_space<vmem>>, vector<8x1xf32>
    %c0_1 = arith.constant 0 : index
    %c0_2 = arith.constant 0 : index
    %c0_3 = arith.constant 0 : index
    %1 = vector.load %arg3[%c0_1, %c0_2, %c0_3] : memref<1x1x16xf32, #tpu.memory_space<vmem>>, vector<1x1x16xf32>
    %2 = vector.shape_cast %1 : vector<1x1x16xf32> to vector<1x16xf32>
    %c0_4 = arith.constant 0 : index
    %c0_5 = arith.constant 0 : index
    %3 = vector.load %arg5[%c0_4, %c0_5] : memref<8x1xf32, #tpu.memory_space<vmem>>, vector<8x1xf32>
    %4 = vector.broadcast %2 : vector<1x16xf32> to vector<8x16xf32>
    %5 = vector.broadcast %3 : vector<8x1xf32> to vector<8x16xf32>
    %6 = arith.mulf %4, %5 : vector<8x16xf32>
    %7 = math.exp %6 : vector<8x16xf32>
    %8 = vector.broadcast %0 : vector<8x1xf32> to vector<8x16xf32>
    %9 = arith.mulf %8, %7 : vector<8x16xf32>
    %c0_6 = arith.constant 0 : index
    %c0_7 = arith.constant 0 : index
    %c0_8 = arith.constant 0 : index
    %10 = vector.load %arg6[%c0_6, %c0_7, %c0_8] : memref<1x8x16xf32, #tpu.memory_space<vmem>>, vector<1x8x16xf32>
    %11 = vector.shape_cast %10 : vector<1x8x16xf32> to vector<8x16xf32>
    %12 = vector.shape_cast %9 : vector<8x16xf32> to vector<1x8x16xf32>
    tpu.vector_store %arg6[%c0_6, %c0_7, %c0_8], %12 {strides = array<i32>} : memref<1x8x16xf32, #tpu.memory_space<vmem>>, vector<1x8x16xf32>,
    return
  }
  func.func @transform_0(%arg0: i32, %arg1: i32, %arg2: i32) -> (i32, i32, i32) {
    %c0_i32 = arith.constant 0 : i32
    %c0_i32_0 = arith.constant 0 : i32
    return %arg0, %c0_i32, %arg1 : i32, i32, i32
  }
  func.func @transform_1(%arg0: i32, %arg1: i32, %arg2: i32) -> (i32, i32) {
    %c0_i32 = arith.constant 0 : i32
    %c0_i32_0 = arith.constant 0 : i32
    return %arg2, %c0_i32 : i32, i32
  }
  func.func @transform_2(%arg0: i32, %arg1: i32, %arg2: i32) -> (i32, i32) {
    %c0_i32 = arith.constant 0 : i32
    %c0_i32_0 = arith.constant 0 : i32
    return %arg2, %c0_i32 : i32, i32
  }
  func.func @transform_3(%arg0: i32, %arg1: i32, %arg2: i32) -> (i32, i32, i32) {
    %c0_i32 = arith.constant 0 : i32
    return %arg0, %arg2, %arg1 : i32, i32, i32
  }
}

</mosaic_0001>

<llo_original>
// kernel: tpu_custom_call.1
$region0: #{tpu_custom_call.1}
  #allocation0 [shape = 'u32[]', space=smem, size = 0x4, offset = 0x4, fixed_abs, tag = 'smem constant byte address 0x4 - core index']
  #allocation1 [shape = 'u32[72,128]{1,0:T(1,128)}', space=vmem, size = 0x9000, scoped, tag = 'internal scratch']
  %s0 = inlined_call_operand.vmem [shape: f32[2,1,16], index: 0, kind: input, shape index: {}]
  %s1 = inlined_call_operand.vmem [shape: f32[8,1], index: 1, kind: input, shape index: {}]
  %s2 = inlined_call_operand.vmem [shape: f32[8,1], index: 2, kind: input, shape index: {}]
  %s3 = inlined_call_operand.hbm [shape: f32[2,8,16], index: 3, kind: output, shape index: {}]
  %s4 = sld [smem:[#allocation0]]
  $region45: #{tpu_custom_call.1} parent=0
    _
  %s6 = ssub.s32 1, %s4
  %s7 = scalar_select 0, %s6, %s4
  $region1: #{tpu_custom_call.1} parent=0
    #allocation2 [shape = 'u8[8192]{0}', space=vmem, size = 0x2000, scoped, tag = 'output window, operand 0']
    #allocation3 [shape = 's32[2]{0}', space=sflag, size = 0x8, scoped, tag = 'scoped memory for tpu_custom_call.1']
    %8 = vsyncpa [#allocation3], 0
    %s9 = scalar_lea.sflag [#allocation3], 1
    %10 = vsyncpa %s9, 0
    loop: start=0, step=1, limit=4
    $region2: #{tpu_custom_call.1} parent=1 // loop_pre_header
      _
    $region3: #{tpu_custom_call.1} parent=1 // loop_header
      %s12 = sphi 0, %s16
      %p13 = scmp.ge.s32.totalorder %s12, 4
      %s19 = sphi 0, %s38
      %s20 = sphi 0, %s34
      %s21 = sphi 0, %s30
      %s22 = sphi 0, %s19
      %s23 = sphi 0, %s20
      %s24 = sphi 0, %s21
      %s25 = sphi 0, %s22
      %s26 = sphi 0, %s23
      %s27 = sphi 0, %s24
      %s43 = sphi 0, %s45
      %s46 = sphi 0, %s43
      %s47 = sphi 0, %s46
      %s63 = sphi 0, %s47
      %s69 = sphi 0, %s71
      %s72 = sphi 0, %s69
      %s73 = sphi 0, %s72
      %s89 = sphi 0, %s73
      %s95 = sphi 0, %s97
      %s98 = sphi 0, %s95
      %s99 = sphi 0, %s98
      %s115 = sphi 0, %s99
      %s125 = sphi 0, %s127
      %s128 = sphi 0, %s125
      %s129 = sphi 0, %s128
      %s145 = sphi 0, %s129
    $region4: #{tpu_custom_call.1} parent=1 // loop_header_branch
      %15 = sbr.rel (%p13) target = $region8
    $region5: #{tpu_custom_call.1} parent=1 // loop_body
      %s17 = ssub.s32 %s12, 1
      %s18 = ssub.s32 %s12, 2
      %s28 = sadd.s32 1, %s21
      %p29 = scmp.ge.s32.totalorder %s28, 1
      %s30 = scalar_select %p29, 0, %s28
      %s31 = sadd.s32 1, %s20
      %s32 = scalar_select %p29, %s31, %s20
      %p33 = scmp.ge.s32.totalorder %s32, 1
      %s34 = scalar_select %p33, 0, %s32
      %s35 = sadd.s32 1, %s19
      %s36 = scalar_select %p33, %s35, %s19
      %p37 = scmp.ge.s32.totalorder %s36, 2
      %s38 = scalar_select %p37, 0, %s36
      %s39 = ssub.s32 %s19, %s38
      %s40 = ssub.s32 %s20, %s34
      %s41 = sor.u32 %s39, %s40
      %p42 = scmp.eq.s32.totalorder %s41, 0
      %s44 = sadd.s32 %s43, 1
      %s45 = scalar_select %p42, %s43, %s44
      %p48 = pneg %p42
      %p49 = scmp.eq.s32.totalorder %s12, 1
      %p50 = por %p48, %p49
      %p51 = scmp.ne.s32.totalorder %s43, %s46
      %p52 = scmp.eq.s32.totalorder %s12, 0
      %p53 = por %p51, %p52
      %p54 = scmp.ne.s32.totalorder %s43, %s46
      %p55 = scmp.eq.s32.totalorder %s17, 1
      %p56 = por %p54, %p55
      %p57 = scmp.ne.s32.totalorder %s46, %s47
      %p58 = scmp.eq.s32.totalorder %s17, 0
      %p59 = por %p57, %p58
      %p60 = scmp.ne.s32.totalorder %s46, %s47
      %p61 = scmp.eq.s32.totalorder %s18, 1
      %p62 = por %p60, %p61
      %p64 = scmp.ne.s32.totalorder %s47, %s63
      %p65 = scmp.eq.s32.totalorder %s18, 0
      %p66 = por %p64, %p65
      %s67 = ssub.s32 %s21, %s30
      %p68 = scmp.eq.s32.totalorder %s67, 0
      %s70 = sadd.s32 %s69, 1
      %s71 = scalar_select %p68, %s69, %s70
      %p74 = pneg %p68
      %p75 = scmp.eq.s32.totalorder %s12, 1
      %p76 = por %p74, %p75
      %p77 = scmp.ne.s32.totalorder %s69, %s72
      %p78 = scmp.eq.s32.totalorder %s12, 0
      %p79 = por %p77, %p78
      %p80 = scmp.ne.s32.totalorder %s69, %s72
      %p81 = scmp.eq.s32.totalorder %s17, 1
      %p82 = por %p80, %p81
      %p83 = scmp.ne.s32.totalorder %s72, %s73
      %p84 = scmp.eq.s32.totalorder %s17, 0
      %p85 = por %p83, %p84
      %p86 = scmp.ne.s32.totalorder %s72, %s73
      %p87 = scmp.eq.s32.totalorder %s18, 1
      %p88 = por %p86, %p87
      %p90 = scmp.ne.s32.totalorder %s73, %s89
      %p91 = scmp.eq.s32.totalorder %s18, 0
      %p92 = por %p90, %p91
      %s93 = ssub.s32 %s21, %s30
      %p94 = scmp.eq.s32.totalorder %s93, 0
      %s96 = sadd.s32 %s95, 1
      %s97 = scalar_select %p94, %s95, %s96
      %p100 = pneg %p94
      %p101 = scmp.eq.s32.totalorder %s12, 1
      %p102 = por %p100, %p101
      %p103 = scmp.ne.s32.totalorder %s95, %s98
      %p104 = scmp.eq.s32.totalorder %s12, 0
      %p105 = por %p103, %p104
      %p106 = scmp.ne.s32.totalorder %s95, %s98
      %p107 = scmp.eq.s32.totalorder %s17, 1
      %p108 = por %p106, %p107
      %p109 = scmp.ne.s32.totalorder %s98, %s99
      %p110 = scmp.eq.s32.totalorder %s17, 0
      %p111 = por %p109, %p110
      %p112 = scmp.ne.s32.totalorder %s98, %s99
      %p113 = scmp.eq.s32.totalorder %s18, 1
      %p114 = por %p112, %p113
      %p116 = scmp.ne.s32.totalorder %s99, %s115
      %p117 = scmp.eq.s32.totalorder %s18, 0
      %p118 = por %p116, %p117
      %s119 = ssub.s32 %s19, %s38
      %s120 = ssub.s32 %s21, %s30
      %s121 = sor.u32 %s119, %s120
      %s122 = ssub.s32 %s20, %s34
      %s123 = sor.u32 %s121, %s122
      %p124 = scmp.eq.s32.totalorder %s123, 0
      %s126 = sadd.s32 %s125, 1
      %s127 = scalar_select %p124, %s125, %s126
      %p130 = pneg %p124
      %p131 = scmp.eq.s32.totalorder %s12, 1
      %p132 = por %p130, %p131
      %p133 = scmp.ne.s32.totalorder %s125, %s128
      %p134 = scmp.eq.s32.totalorder %s12, 0
      %p135 = por %p133, %p134
      %p136 = scmp.ne.s32.totalorder %s125, %s128
      %p137 = scmp.eq.s32.totalorder %s17, 1
      %p138 = por %p136, %p137
      %p139 = scmp.ne.s32.totalorder %s128, %s129
      %p140 = scmp.eq.s32.totalorder %s17, 0
      %p141 = por %p139, %p140
      %p142 = scmp.ne.s32.totalorder %s128, %s129
      %p143 = scmp.eq.s32.totalorder %s18, 1
      %p144 = por %p142, %p143
      %p146 = scmp.ne.s32.totalorder %s129, %s145
      %p147 = scmp.eq.s32.totalorder %s18, 0
      %p148 = por %p146, %p147
      %p149 = scmp.le.s32.totalorder 1, %s12
      %p150 = scmp.lt.s32.totalorder %s12, 3
      %p151 = pnand %p149, %p150
      %p152 = pneg %p151
      // Predicated region
      $region9: #{tpu_custom_call.1} parent=5 // pred_check
        _
      $region10: #{tpu_custom_call.1} parent=5 // pred_check_branch
        %154 = sbr.rel (%p151) target = $region12
      $region11: #{tpu_custom_call.1} parent=5 // pred_region
        %s155 = ssub.s32 %s12, 1
        // Predicated region
        $region13: #{tpu_custom_call.1} parent=11 // pred_check
          %p156 = pneg %p85
        $region14: #{tpu_custom_call.1} parent=11 // pred_check_branch
          %158 = sbr.rel (%p156) target = $region16
        $region15: #{tpu_custom_call.1} parent=11 // pred_region
          %p159 = scmp.lt.s32.totalorder %s24, 0
          %s160 = scalar_select %p159, %s24, 0
          %s161 = smul.addr %s160, 8
          %s162 = scalar_lea.vmem %s1, %s161
        $region16: #{tpu_custom_call.1} parent=11 // pred_fallthru
          _
        // Predicated region
        $region17: #{tpu_custom_call.1} parent=11 // pred_check
          %p163 = pneg %p111
        $region18: #{tpu_custom_call.1} parent=11 // pred_check_branch
          %165 = sbr.rel (%p163) target = $region20
        $region19: #{tpu_custom_call.1} parent=11 // pred_region
          %p166 = scmp.lt.s32.totalorder %s24, 0
          %s167 = scalar_select %p166, %s24, 0
          %s168 = smul.addr %s167, 8
          %s169 = scalar_lea.vmem %s2, %s168
        $region20: #{tpu_custom_call.1} parent=11 // pred_fallthru
          _
      $region12: #{tpu_custom_call.1} parent=5 // pred_fallthru
        _
      %p170 = scmp.lt.s32.totalorder %s12, 2
      // Predicated region
      $region21: #{tpu_custom_call.1} parent=5 // pred_check
        %p171 = pneg %p170
      $region22: #{tpu_custom_call.1} parent=5 // pred_check_branch
        %173 = sbr.rel (%p171) target = $region24
      $region23: #{tpu_custom_call.1} parent=5 // pred_region
        // Predicated region
        $region25: #{tpu_custom_call.1} parent=23 // pred_check
          %p174 = pneg %p53
        $region26: #{tpu_custom_call.1} parent=23 // pred_check_branch
          %176 = sbr.rel (%p174) target = $region28
        $region27: #{tpu_custom_call.1} parent=23 // pred_region
          %p177 = scmp.lt.s32.totalorder %s19, 1
          %s178 = scalar_select %p177, %s19, 1
          %p179 = scmp.lt.s32.totalorder %s20, 0
          %s180 = scalar_select %p179, %s20, 0
          %s181 = sadd.s32 %s180, %s178
          %s182 = scalar_lea.vmem %s0, %s181
        $region28: #{tpu_custom_call.1} parent=23 // pred_fallthru
          _
      $region24: #{tpu_custom_call.1} parent=5 // pred_fallthru
        _
      %p183 = scmp.le.s32.totalorder 1, %s12
      %p184 = scmp.lt.s32.totalorder %s12, 3
      %p185 = pnand %p183, %p184
      %p186 = pneg %p185
      // Predicated region
      $region29: #{tpu_custom_call.1} parent=5 // pred_check
        _
      $region30: #{tpu_custom_call.1} parent=5 // pred_check_branch
        %188 = sbr.rel (%p185) target = $region32
      $region31: #{tpu_custom_call.1} parent=5 // pred_region
        %s189 = ssub.s32 %s12, 1
        %p190 = scmp.lt.s32.totalorder %s22, 1
        %s191 = scalar_select %p190, %s22, 1
        %p192 = scmp.lt.s32.totalorder %s23, 0
        %s193 = scalar_select %p192, %s23, 0
        %s194 = sadd.s32 %s193, %s191
        %s195 = scalar_lea.vmem %s0, %s194
        %p196 = pneg %p59
        %p197 = pneg %p56
        %p198 = scmp.lt.s32.totalorder %s24, 0
        %s199 = scalar_select %p198, %s24, 0
        %s200 = smul.addr %s199, 8
        %s201 = scalar_lea.vmem %s1, %s200
        %p202 = pneg %p85
        %p203 = pneg %p82
        %p204 = scmp.lt.s32.totalorder %s24, 0
        %s205 = scalar_select %p204, %s24, 0
        %s206 = smul.addr %s205, 8
        %s207 = scalar_lea.vmem %s2, %s206
        %p208 = pneg %p111
        %p209 = pneg %p108
        %p210 = pneg %p141
        %p211 = pneg %p138
        %s212 = sand.u32 %s128, 1
        %s213 = scalar_lea.sflag [#allocation3], %s212
        %s214 = sand.u32 %s128, 1
        %s215 = smul.addr %s214, 8
        %s216 = scalar_lea.vmem [#allocation2], %s215
        %p217 = scmp.lt.s32.totalorder %s22, 1
        %s218 = scalar_select %p217, %s22, 1
        %p219 = scmp.lt.s32.totalorder %s23, 0
        %s220 = scalar_select %p219, %s23, 0
        %s221 = sadd.s32 %s220, %s218
        %s222 = scalar_lea.vmem %s0, %s221
        %p223 = scmp.lt.s32.totalorder %s24, 0
        %s224 = scalar_select %p223, %s24, 0
        %s225 = smul.addr %s224, 8
        %s226 = scalar_lea.vmem %s1, %s225
        %p227 = scmp.lt.s32.totalorder %s24, 0
        %s228 = scalar_select %p227, %s24, 0
        %s229 = smul.addr %s228, 8
        %s230 = scalar_lea.vmem %s2, %s229
        %v231 = vld [vmem:[%s226] sm:$0xff]
        %v232 = vld [vmem:[%s222] sm:$0x1]
        %v233 = vld [vmem:[%s230] sm:$0xff]
        %v235 = vperm.slane %v232, 0
        %238 = vset.pattern.permute.xlu0 0
        %239 = vperm.xlu0 %238, %v233
        %v240 = vpop.permute.xlu0 %239
        %v242 = vmul.f32 %v235, %v240
        %v243 = vmul.f32 %v242, 1.442695
        %v244 = vpow.pop %v243
        %246 = vset.pattern.permute.xlu0 0
        %247 = vperm.xlu0 %246, %v231
        %v248 = vpop.permute.xlu0 %247
        %v250 = vmul.f32 %v248, %v244
        %vm251 = vcmask 130048
        %252 = vst.msk [vmem:[%s216] sm:$0xff] %vm251, %v250
        %s253 = sand.u32 %s128, 1
        %s254 = scalar_lea.sflag [#allocation3], %s253
        %s255 = sand.u32 %s128, 1
        %s256 = smul.addr %s255, 8
        %s257 = scalar_lea.vmem [#allocation2], %s256
        // Predicated region
        $region33: #{tpu_custom_call.1} parent=31 // pred_check
          %p258 = pneg %p138
        $region34: #{tpu_custom_call.1} parent=31 // pred_check_branch
          %260 = sbr.rel (%p258) target = $region36
        $region35: #{tpu_custom_call.1} parent=31 // pred_region
          %262 = vsyncadd %s254, 0
          %s263 = sadd.s32 %s23, %s24
          %s264 = sadd.s32 %s263, %s22
          %s265 = smul.addr %s264, 8
          %s266 = scalar_lea.hbm %s3, %s265
          %s268 = sshll.u32 %s257, 4
          %s269 = int_to_ptr.vmem [resolvable:$true] %s268
          %s270 = sshll.u32 %s266, 4
          %s271 = int_to_ptr.hbm [resolvable:$true] %s270
          %273 = dma.vmem_to_hbm [thread:$0]  %s269, 128, %s271, %s254
        $region36: #{tpu_custom_call.1} parent=31 // pred_fallthru
          _
      $region32: #{tpu_custom_call.1} parent=5 // pred_fallthru
        _
      %p274 = scmp.le.s32.totalorder 2, %s12
      // Predicated region
      $region37: #{tpu_custom_call.1} parent=5 // pred_check
        %p275 = pneg %p274
      $region38: #{tpu_custom_call.1} parent=5 // pred_check_branch
        %277 = sbr.rel (%p275) target = $region40
      $region39: #{tpu_custom_call.1} parent=5 // pred_region
        %s278 = ssub.s32 %s12, 2
        // Predicated region
        $region41: #{tpu_custom_call.1} parent=39 // pred_check
          %p279 = pneg %p144
        $region42: #{tpu_custom_call.1} parent=39 // pred_check_branch
          %281 = sbr.rel (%p279) target = $region44
        $region43: #{tpu_custom_call.1} parent=39 // pred_region
          %s282 = sand.u32 %s129, 1
          %s283 = scalar_lea.sflag [#allocation3], %s282
          %s284 = sand.u32 %s129, 1
          %s285 = smul.addr %s284, 8
          %s286 = scalar_lea.vmem [#allocation2], %s285
          %288 = dma.done %s283, 128
        $region44: #{tpu_custom_call.1} parent=39 // pred_fallthru
          _
      $region40: #{tpu_custom_call.1} parent=5 // pred_fallthru
        _
    $region6: #{tpu_custom_call.1} parent=1 // loop_footer
      %s16 = sadd.s32 1, %s12
    $region7: #{tpu_custom_call.1} parent=1 // loop_footer_branch
      %11 = sbr.rel target = $region3
    $region8: #{tpu_custom_call.1} parent=1 // loop_exit
      _
    %289 = vsyncpa [#allocation3], 1
    %s290 = scalar_lea.sflag [#allocation3], 1
    %291 = vsyncpa %s290, 1

</llo_original>
